<compile_context>
chip_gen: v7x
topology: tpu7x:2x2x1
jax: 0.10.0
libtpu: 0.0.40
codegen_flags: <defaults>
</compile_context>

<pallas_src>
import math

import jax
import jax.numpy as jnp
from jax import lax
from jax.experimental import pallas as pl
from jax.experimental.pallas import tpu as pltpu


def _softplus(x):
    # Stable softplus matching torch.nn.functional.softplus (threshold=20):
    # returns x for large x, avoids exp overflow in f32.
    return jnp.where(x > 20.0, x, jnp.log1p(jnp.exp(jnp.minimum(x, 20.0))))


def bayes_linear_kernel(x_ref, wmu_ref, wrho_ref, weps_ref,
                        bmu_ref, brho_ref, beps_ref, out_ref, acc_ref):
    k = pl.program_id(1)

    @pl.when(k == 0)
    def _init():
        acc_ref[...] = jnp.zeros_like(acc_ref)

    # Sample this (tn, tk) weight tile: w = mu + softplus(rho) * eps  (f32).
    w = wmu_ref[...] + _softplus(wrho_ref[...]) * weps_ref[...]

    # x (batch, tk) contracted with w (tn, tk) along K -> (batch, tn).
    # dot_general avoids materializing w.T (no XLU transpose, half the vreg
    # pressure from the sampled weight).
    acc_ref[...] += lax.dot_general(
        x_ref[...], w,
        dimension_numbers=(((1,), (1,)), ((), ())),
        preferred_element_type=jnp.float32)

    @pl.when(k == pl.num_programs(1) - 1)
    def _finalize():
        b = bmu_ref[...] + _softplus(brho_ref[...]) * beps_ref[...]
        out_ref[...] = (acc_ref[...] + b).astype(out_ref.dtype)


def _pick_tile(dim, pref):
    """Largest multiple of 128 <= pref that divides dim; else the full dim."""
    if dim <= pref:
        return dim
    t = (pref // 128) * 128
    while t >= 128:
        if dim % t == 0:
            return t
        t -= 128
    return dim


def bayes_linear(x, weight_mu, weight_rho, weight_eps,
                 bias_mu, bias_rho, bias_eps, *, tn=256, tk=512):
    batch, in_features = x.shape
    out_features = weight_mu.shape[0]

    tn = _pick_tile(out_features, tn)
    tk = _pick_tile(in_features, tk)
    grid = (out_features // tn, in_features // tk)   # (N parallel, K reduction)

    itemsize = x.dtype.itemsize
    cost = pl.CostEstimate(
        flops=2 * batch * in_features * out_features,
        transcendentals=2 * (out_features * in_features + out_features),
        bytes_accessed=(x.size + 3 * weight_mu.size + 3 * bias_mu.size
                        + batch * out_features) * itemsize,
    )

    grid_spec = pltpu.PrefetchScalarGridSpec(
        num_scalar_prefetch=0,
        grid=grid,
        in_specs=[
            pl.BlockSpec((batch, tk), lambda n, k: (0, k)),   # x
            pl.BlockSpec((tn, tk), lambda n, k: (n, k)),      # weight_mu
            pl.BlockSpec((tn, tk), lambda n, k: (n, k)),      # weight_rho
            pl.BlockSpec((tn, tk), lambda n, k: (n, k)),      # weight_eps
            pl.BlockSpec((1, tn), lambda n, k: (0, n)),       # bias_mu
            pl.BlockSpec((1, tn), lambda n, k: (0, n)),       # bias_rho
            pl.BlockSpec((1, tn), lambda n, k: (0, n)),       # bias_eps
        ],
        out_specs=pl.BlockSpec((batch, tn), lambda n, k: (0, n)),
        scratch_shapes=[pltpu.VMEM((batch, tn), jnp.float32)],
    )

    return pl.pallas_call(
        bayes_linear_kernel,
        out_shape=jax.ShapeDtypeStruct((batch, out_features), x.dtype),
        grid_spec=grid_spec,
        compiler_params=pltpu.CompilerParams(
            dimension_semantics=("parallel", "arbitrary"),
        ),
        cost_estimate=cost,
    )(x, weight_mu, weight_rho, weight_eps, bias_mu, bias_rho, bias_eps)


def init_params(key, in_features, out_features, dtype=jnp.float32):
    """Deterministic re-implementation of BayesLinear.reset_parameters()."""
    k_wmu, k_wrho, k_bmu, k_brho = jax.random.split(key, 4)

    # kaiming_uniform_(a=sqrt(5)) on (out, in): bound = 1/sqrt(fan_in)
    fan_in = in_features
    w_bound = 1.0 / math.sqrt(fan_in)
    weight_mu = jax.random.uniform(
        k_wmu, (out_features, in_features), dtype, -w_bound, w_bound)

    # rho ~ Normal(0.1, 0.01), then rho = log(expm1(rho))  (inverse softplus)
    weight_rho = jax.random.normal(
        k_wrho, (out_features, in_features), dtype) * 0.01 + 0.1
    weight_rho = jnp.log(jnp.expm1(weight_rho))

    b_bound = 1.0 / math.sqrt(fan_in)
    bias_mu = jax.random.uniform(k_bmu, (1, out_features), dtype, -b_bound, b_bound)
    bias_rho = jax.random.normal(k_brho, (1, out_features), dtype) * 0.01 + 0.1
    bias_rho = jnp.log(jnp.expm1(bias_rho))

    return weight_mu, weight_rho, bias_mu, bias_rho


if __name__ == "__main__":
    batch, in_features, out_features = 8, 512, 256
    dtype = jnp.float32

    key = jax.random.PRNGKey(0)
    k_params, k_x, k_weps, k_beps = jax.random.split(key, 4)

    weight_mu, weight_rho, bias_mu, bias_rho = init_params(
        k_params, in_features, out_features, dtype)

    x = jax.random.normal(k_x, (batch, in_features), dtype)
    weight_eps = jax.random.normal(k_weps, (out_features, in_features), dtype)
    bias_eps = jax.random.normal(k_beps, (1, out_features), dtype)

    # tn=128, tk=256 -> grid (2, 2): exercises both the parallel N axis and the
    # K-reduction accumulator path.
    out = bayes_linear(x, weight_mu, weight_rho, weight_eps,
                       bias_mu, bias_rho, bias_eps, tn=128, tk=256)
    jax.block_until_ready(out)

    # Reference check in plain JAX (same math, f32 accumulation).
    w = weight_mu + _softplus(weight_rho) * weight_eps
    b = bias_mu + _softplus(bias_rho) * bias_eps
    ref = jnp.dot(x, w.T, precision=jax.lax.Precision.HIGHEST) + b

    assert out.shape == (batch, out_features)
    assert jnp.allclose(out, ref, atol=1e-4, rtol=1e-4), \
        float(jnp.max(jnp.abs(out - ref)))

    print("KERNEL_OK")
</pallas_src>

<mosaic_0001>
module attributes {stable_mosaic.version = 11 : i64} {
  func.func @bayes_linear_kernel(%arg0: i32, %arg1: i32, %arg2: memref<8x256xf32, #tpu.memory_space<vmem>>, %arg3: memref<128x256xf32, #tpu.memory_space<vmem>>, %arg4: memref<128x256xf32, #tpu.memory_space<vmem>>, %arg5: memref<128x256xf32, #tpu.memory_space<vmem>>, %arg6: memref<1x128xf32, #tpu.memory_space<vmem>>, %arg7: memref<1x128xf32, #tpu.memory_space<vmem>>, %arg8: memref<1x128xf32, #tpu.memory_space<vmem>>, %arg9: memref<8x128xf32, #tpu.memory_space<vmem>>, %arg10: memref<8x128xf32, #tpu.memory_space<vmem>>) attributes {dimension_semantics = [#tpu.dimension_semantics<parallel>, #tpu.dimension_semantics<arbitrary>], iteration_bounds = array<i64: 2, 2>, scalar_prefetch = 0 : i64, scratch_operands = 1 : i64, tpu.core_type = #tpu.core_type<tc>, window_params = [{transform_indices = @transform_0, window_bounds = array<i64: 8, 256>}, {transform_indices = @transform_1, window_bounds = array<i64: 128, 256>}, {transform_indices = @transform_2, window_bounds = array<i64: 128, 256>}, {transform_indices = @transform_3, window_bounds = array<i64: 128, 256>}, {transform_indices = @transform_4, window_bounds = array<i64: 1, 128>}, {transform_indices = @transform_5, window_bounds = array<i64: 1, 128>}, {transform_indices = @transform_6, window_bounds = array<i64: 1, 128>}, {transform_indices = @transform_7, window_bounds = array<i64: 8, 128>}]} {
    %c0_i32 = arith.constant 0 : i32
    %0 = arith.cmpi eq, %arg1, %c0_i32 : i32
    %1 = arith.extui %0 : i1 to i32
    %c0_i32_0 = arith.constant 0 : i32
    %2 = arith.cmpi ne, %1, %c0_i32_0 : i32
    scf.if %2 {
      %cst_15 = arith.constant 0.000000e+00 : f32
      %23 = vector.broadcast %cst_15 : f32 to vector<8x128xf32>
      %c0_16 = arith.constant 0 : index
      %c0_17 = arith.constant 0 : index
      %24 = vector.load %arg10[%c0_16, %c0_17] : memref<8x128xf32, #tpu.memory_space<vmem>>, vector<8x128xf32>
      tpu.vector_store %arg10[%c0_16, %c0_17], %23 {strides = array<i32>} : memref<8x128xf32, #tpu.memory_space<vmem>>, vector<8x128xf32>,
    } else {
    }
    %c0 = arith.constant 0 : index
    %c0_1 = arith.constant 0 : index
    %3 = vector.load %arg3[%c0, %c0_1] : memref<128x256xf32, #tpu.memory_space<vmem>>, vector<128x256xf32>
    %c0_2 = arith.constant 0 : index
    %c0_3 = arith.constant 0 : index
    %4 = vector.load %arg4[%c0_2, %c0_3] : memref<128x256xf32, #tpu.memory_space<vmem>>, vector<128x256xf32>
    %cst = arith.constant 2.000000e+01 : f32
    %5 = vector.broadcast %cst : f32 to vector<128x256xf32>
    %6 = arith.cmpf ogt, %4, %5 : vector<128x256xf32>
    %cst_4 = arith.constant 2.000000e+01 : f32
    %7 = vector.broadcast %cst_4 : f32 to vector<128x256xf32>
    %8 = arith.minimumf %4, %7 : vector<128x256xf32>
    %9 = math.exp %8 : vector<128x256xf32>
    %10 = math.log1p %9 : vector<128x256xf32>
    %11 = arith.select %6, %4, %10 : vector<128x256xi1>, vector<128x256xf32>
    %c0_5 = arith.constant 0 : index
    %c0_6 = arith.constant 0 : index
    %12 = vector.load %arg5[%c0_5, %c0_6] : memref<128x256xf32, #tpu.memory_space<vmem>>, vector<128x256xf32>
    %13 = arith.mulf %11, %12 : vector<128x256xf32>
    %14 = arith.addf %3, %13 : vector<128x256xf32>
    %c0_7 = arith.constant 0 : index
    %c0_8 = arith.constant 0 : index
    %15 = vector.load %arg10[%c0_7, %c0_8] : memref<8x128xf32, #tpu.memory_space<vmem>>, vector<8x128xf32>
    %c0_9 = arith.constant 0 : index
    %c0_10 = arith.constant 0 : index
    %16 = vector.load %arg2[%c0_9, %c0_10] : memref<8x256xf32, #tpu.memory_space<vmem>>, vector<8x256xf32>
    %cst_11 = arith.constant dense<0.000000e+00> : vector<8x128xf32>
    %17 = tpu.matmul %16, %14, %cst_11 {dimension_numbers = #tpu.dot_dimension_numbers<[1], [1], [0], [0], [0, 0, 1, 0], [], []>} : vector<8x256xf32>, vector<128x256xf32>, vector<8x128xf32> -> vector<8x128xf32>
    %18 = arith.addf %15, %17 : vector<8x128xf32>
    %c0_12 = arith.constant 0 : index
    %c0_13 = arith.constant 0 : index
    %19 = vector.load %arg10[%c0_12, %c0_13] : memref<8x128xf32, #tpu.memory_space<vmem>>, vector<8x128xf32>
    tpu.vector_store %arg10[%c0_12, %c0_13], %18 {strides = array<i32>} : memref<8x128xf32, #tpu.memory_space<vmem>>, vector<8x128xf32>,
    %c1_i32 = arith.constant 1 : i32
    %20 = arith.cmpi eq, %arg1, %c1_i32 : i32
    %21 = arith.extui %20 : i1 to i32
    %c0_i32_14 = arith.constant 0 : i32
    %22 = arith.cmpi ne, %21, %c0_i32_14 : i32
    scf.if %22 {
      %c0_15 = arith.constant 0 : index
      %c0_16 = arith.constant 0 : index
      %23 = vector.load %arg6[%c0_15, %c0_16] : memref<1x128xf32, #tpu.memory_space<vmem>>, vector<1x128xf32>
      %c0_17 = arith.constant 0 : index
      %c0_18 = arith.constant 0 : index
      %24 = vector.load %arg7[%c0_17, %c0_18] : memref<1x128xf32, #tpu.memory_space<vmem>>, vector<1x128xf32>
      %cst_19 = arith.constant 2.000000e+01 : f32
      %25 = vector.broadcast %cst_19 : f32 to vector<1x128xf32>
      %26 = arith.cmpf ogt, %24, %25 : vector<1x128xf32>
      %cst_20 = arith.constant 2.000000e+01 : f32
      %27 = vector.broadcast %cst_20 : f32 to vector<1x128xf32>
      %28 = arith.minimumf %24, %27 : vector<1x128xf32>
      %29 = math.exp %28 : vector<1x128xf32>
      %30 = math.log1p %29 : vector<1x128xf32>
      %31 = arith.select %26, %24, %30 : vector<1x128xi1>, vector<1x128xf32>
      %c0_21 = arith.constant 0 : index
      %c0_22 = arith.constant 0 : index
      %32 = vector.load %arg8[%c0_21, %c0_22] : memref<1x128xf32, #tpu.memory_space<vmem>>, vector<1x128xf32>
      %33 = arith.mulf %31, %32 : vector<1x128xf32>
      %34 = arith.addf %23, %33 : vector<1x128xf32>
      %c0_23 = arith.constant 0 : index
      %c0_24 = arith.constant 0 : index
      %35 = vector.load %arg10[%c0_23, %c0_24] : memref<8x128xf32, #tpu.memory_space<vmem>>, vector<8x128xf32>
      %36 = vector.broadcast %34 : vector<1x128xf32> to vector<8x128xf32>
      %37 = arith.addf %35, %36 : vector<8x128xf32>
      %c0_25 = arith.constant 0 : index
      %c0_26 = arith.constant 0 : index
      %38 = vector.load %arg9[%c0_25, %c0_26] : memref<8x128xf32, #tpu.memory_space<vmem>>, vector<8x128xf32>
      tpu.vector_store %arg9[%c0_25, %c0_26], %37 {strides = array<i32>} : memref<8x128xf32, #tpu.memory_space<vmem>>, vector<8x128xf32>,
    } else {
    }
    return
  }
  func.func @transform_0(%arg0: i32, %arg1: i32) -> (i32, i32) {
    %c0_i32 = arith.constant 0 : i32
    %c0_i32_0 = arith.constant 0 : i32
    return %c0_i32, %arg1 : i32, i32
  }
  func.func @transform_1(%arg0: i32, %arg1: i32) -> (i32, i32) {
    %c0_i32 = arith.constant 0 : i32
    return %arg0, %arg1 : i32, i32
  }
  func.func @transform_2(%arg0: i32, %arg1: i32) -> (i32, i32) {
    %c0_i32 = arith.constant 0 : i32
    return %arg0, %arg1 : i32, i32
  }
  func.func @transform_3(%arg0: i32, %arg1: i32) -> (i32, i32) {
    %c0_i32 = arith.constant 0 : i32
    return %arg0, %arg1 : i32, i32
  }
  func.func @transform_4(%arg0: i32, %arg1: i32) -> (i32, i32) {
    %c0_i32 = arith.constant 0 : i32
    %c0_i32_0 = arith.constant 0 : i32
    return %c0_i32, %arg0 : i32, i32
  }
  func.func @transform_5(%arg0: i32, %arg1: i32) -> (i32, i32) {
    %c0_i32 = arith.constant 0 : i32
    %c0_i32_0 = arith.constant 0 : i32
    return %c0_i32, %arg0 : i32, i32
  }
  func.func @transform_6(%arg0: i32, %arg1: i32) -> (i32, i32) {
    %c0_i32 = arith.constant 0 : i32
    %c0_i32_0 = arith.constant 0 : i32
    return %c0_i32, %arg0 : i32, i32
  }
  func.func @transform_7(%arg0: i32, %arg1: i32) -> (i32, i32) {
    %c0_i32 = arith.constant 0 : i32
    %c0_i32_0 = arith.constant 0 : i32
    return %c0_i32, %arg0 : i32, i32
  }
}

</mosaic_0001>

<llo_original>
// kernel: tpu_custom_call.1
$region0: #{tpu_custom_call.1}
  #allocation0 [shape = 'u32[]', space=smem, size = 0x4, offset = 0x4, fixed_abs, tag = 'smem constant byte address 0x4 - core index']
  #allocation1 [shape = 'u32[144,128]{1,0:T(1,128)}', space=vmem, size = 0x12000, scoped, tag = 'internal scratch']
  #allocation2 [shape = 'f32[8,128]{1,0:T(8,128)}', space=vmem, size = 0x1000, scoped, tag = 'scratch operand']
  %s0 = inlined_call_operand.hbm [shape: f32[8,512], index: 0, kind: input, shape index: {}]
  %s1 = inlined_call_operand.hbm [shape: f32[256,512], index: 1, kind: input, shape index: {}]
  %s2 = inlined_call_operand.hbm [shape: f32[256,512], index: 2, kind: input, shape index: {}]
  %s3 = inlined_call_operand.hbm [shape: f32[256,512], index: 3, kind: input, shape index: {}]
  %s4 = inlined_call_operand.vmem [shape: f32[1,256], index: 4, kind: input, shape index: {}]
  %s5 = inlined_call_operand.vmem [shape: f32[1,256], index: 5, kind: input, shape index: {}]
  %s6 = inlined_call_operand.vmem [shape: f32[1,256], index: 6, kind: input, shape index: {}]
  %s7 = inlined_call_operand.hbm [shape: f32[8,256], index: 7, kind: output, shape index: {}]
  %s8 = sld [smem:[#allocation0]]
  $region85: #{tpu_custom_call.1} parent=0
    _
  %s10 = ssub.s32 1, %s8
  %s11 = scalar_select 0, %s10, %s8
  $region1: #{tpu_custom_call.1} parent=0
    #allocation3 [shape = 'u8[16384]{0}', space=vmem, size = 0x4000, scoped, tag = 'input window, operand 0']
    #allocation4 [shape = 's32[2]{0}', space=sflag, size = 0x8, scoped, tag = 'scoped memory for tpu_custom_call.1']
    #allocation5 [shape = 's32[2]{0}', space=sflag, size = 0x8, scoped, tag = 'scoped memory for tpu_custom_call.1']
    #allocation6 [shape = 'u8[262144]{0}', space=vmem, size = 0x40000, scoped, tag = 'input window, operand 1']
    #allocation7 [shape = 's32[2]{0}', space=sflag, size = 0x8, scoped, tag = 'scoped memory for tpu_custom_call.1']
    #allocation8 [shape = 'u8[262144]{0}', space=vmem, size = 0x40000, scoped, tag = 'input window, operand 2']
    #allocation9 [shape = 'u8[262144]{0}', space=vmem, size = 0x40000, scoped, tag = 'input window, operand 3']
    #allocation10 [shape = 's32[2]{0}', space=sflag, size = 0x8, scoped, tag = 'scoped memory for tpu_custom_call.1']
    #allocation11 [shape = 'u8[8192]{0}', space=vmem, size = 0x2000, scoped, tag = 'output window, operand 0']
    %12 = vsyncpa [#allocation4], 0
    %s13 = scalar_lea.sflag [#allocation4], 1
    %14 = vsyncpa %s13, 0
    %15 = vsyncpa [#allocation7], 0
    %s16 = scalar_lea.sflag [#allocation7], 1
    %17 = vsyncpa %s16, 0
    %18 = vsyncpa [#allocation10], 0
    %s19 = scalar_lea.sflag [#allocation10], 1
    %20 = vsyncpa %s19, 0
    %21 = vsyncpa [#allocation5], 0
    %s22 = scalar_lea.sflag [#allocation5], 1
    %23 = vsyncpa %s22, 0
    loop: start=0, step=1, limit=6
    $region2: #{tpu_custom_call.1} parent=1 // loop_pre_header
      _
    $region3: #{tpu_custom_call.1} parent=1 // loop_header
      %s25 = sphi 0, %s29
      %p26 = scmp.ge.s32.totalorder %s25, 6
      %s32 = sphi 0, %s44
      %s33 = sphi 0, %s40
      %s34 = sphi 0, %s32
      %s35 = sphi 0, %s33
      %s36 = sphi 0, %s34
      %s37 = sphi 0, %s35
      %s47 = sphi 0, %s49
      %s50 = sphi 0, %s47
      %s51 = sphi 0, %s50
      %s67 = sphi 0, %s51
      %s75 = sphi 0, %s77
      %s78 = sphi 0, %s75
      %s79 = sphi 0, %s78
      %s95 = sphi 0, %s79
      %s103 = sphi 0, %s105
      %s106 = sphi 0, %s103
      %s107 = sphi 0, %s106
      %s123 = sphi 0, %s107
      %s131 = sphi 0, %s133
      %s134 = sphi 0, %s131
      %s135 = sphi 0, %s134
      %s151 = sphi 0, %s135
      %s157 = sphi 0, %s159
      %s160 = sphi 0, %s157
      %s161 = sphi 0, %s160
      %s177 = sphi 0, %s161
      %s183 = sphi 0, %s185
      %s186 = sphi 0, %s183
      %s187 = sphi 0, %s186
      %s203 = sphi 0, %s187
      %s209 = sphi 0, %s211
      %s212 = sphi 0, %s209
      %s213 = sphi 0, %s212
      %s229 = sphi 0, %s213
      %s235 = sphi 0, %s237
      %s238 = sphi 0, %s235
      %s239 = sphi 0, %s238
      %s255 = sphi 0, %s239
    $region4: #{tpu_custom_call.1} parent=1 // loop_header_branch
      %28 = sbr.rel (%p26) target = $region8
    $region5: #{tpu_custom_call.1} parent=1 // loop_body
      %s30 = ssub.s32 %s25, 1
      %s31 = ssub.s32 %s25, 2
      %s38 = sadd.s32 1, %s33
      %p39 = scmp.ge.s32.totalorder %s38, 2
      %s40 = scalar_select %p39, 0, %s38
      %s41 = sadd.s32 1, %s32
      %s42 = scalar_select %p39, %s41, %s32
      %p43 = scmp.ge.s32.totalorder %s42, 2
      %s44 = scalar_select %p43, 0, %s42
      %s45 = ssub.s32 %s33, %s40
      %p46 = scmp.eq.s32.totalorder %s45, 0
      %s48 = sadd.s32 %s47, 1
      %s49 = scalar_select %p46, %s47, %s48
      %p52 = pneg %p46
      %p53 = scmp.eq.s32.totalorder %s25, 3
      %p54 = por %p52, %p53
      %p55 = scmp.ne.s32.totalorder %s47, %s50
      %p56 = scmp.eq.s32.totalorder %s25, 0
      %p57 = por %p55, %p56
      %p58 = scmp.ne.s32.totalorder %s47, %s50
      %p59 = scmp.eq.s32.totalorder %s30, 3
      %p60 = por %p58, %p59
      %p61 = scmp.ne.s32.totalorder %s50, %s51
      %p62 = scmp.eq.s32.totalorder %s30, 0
      %p63 = por %p61, %p62
      %p64 = scmp.ne.s32.totalorder %s50, %s51
      %p65 = scmp.eq.s32.totalorder %s31, 3
      %p66 = por %p64, %p65
      %p68 = scmp.ne.s32.totalorder %s51, %s67
      %p69 = scmp.eq.s32.totalorder %s31, 0
      %p70 = por %p68, %p69
      %s71 = ssub.s32 %s32, %s44
      %s72 = ssub.s32 %s33, %s40
      %s73 = sor.u32 %s71, %s72
      %p74 = scmp.eq.s32.totalorder %s73, 0
      %s76 = sadd.s32 %s75, 1
      %s77 = scalar_select %p74, %s75, %s76
      %p80 = pneg %p74
      %p81 = scmp.eq.s32.totalorder %s25, 3
      %p82 = por %p80, %p81
      %p83 = scmp.ne.s32.totalorder %s75, %s78
      %p84 = scmp.eq.s32.totalorder %s25, 0
      %p85 = por %p83, %p84
      %p86 = scmp.ne.s32.totalorder %s75, %s78
      %p87 = scmp.eq.s32.totalorder %s30, 3
      %p88 = por %p86, %p87
      %p89 = scmp.ne.s32.totalorder %s78, %s79
      %p90 = scmp.eq.s32.totalorder %s30, 0
      %p91 = por %p89, %p90
      %p92 = scmp.ne.s32.totalorder %s78, %s79
      %p93 = scmp.eq.s32.totalorder %s31, 3
      %p94 = por %p92, %p93
      %p96 = scmp.ne.s32.totalorder %s79, %s95
      %p97 = scmp.eq.s32.totalorder %s31, 0
      %p98 = por %p96, %p97
      %s99 = ssub.s32 %s32, %s44
      %s100 = ssub.s32 %s33, %s40
      %s101 = sor.u32 %s99, %s100
      %p102 = scmp.eq.s32.totalorder %s101, 0
      %s104 = sadd.s32 %s103, 1
      %s105 = scalar_select %p102, %s103, %s104
      %p108 = pneg %p102
      %p109 = scmp.eq.s32.totalorder %s25, 3
      %p110 = por %p108, %p109
      %p111 = scmp.ne.s32.totalorder %s103, %s106
      %p112 = scmp.eq.s32.totalorder %s25, 0
      %p113 = por %p111, %p112
      %p114 = scmp.ne.s32.totalorder %s103, %s106
      %p115 = scmp.eq.s32.totalorder %s30, 3
      %p116 = por %p114, %p115
      %p117 = scmp.ne.s32.totalorder %s106, %s107
      %p118 = scmp.eq.s32.totalorder %s30, 0
      %p119 = por %p117, %p118
      %p120 = scmp.ne.s32.totalorder %s106, %s107
      %p121 = scmp.eq.s32.totalorder %s31, 3
      %p122 = por %p120, %p121
      %p124 = scmp.ne.s32.totalorder %s107, %s123
      %p125 = scmp.eq.s32.totalorder %s31, 0
      %p126 = por %p124, %p125
      %s127 = ssub.s32 %s32, %s44
      %s128 = ssub.s32 %s33, %s40
      %s129 = sor.u32 %s127, %s128
      %p130 = scmp.eq.s32.totalorder %s129, 0
      %s132 = sadd.s32 %s131, 1
      %s133 = scalar_select %p130, %s131, %s132
      %p136 = pneg %p130
      %p137 = scmp.eq.s32.totalorder %s25, 3
      %p138 = por %p136, %p137
      %p139 = scmp.ne.s32.totalorder %s131, %s134
      %p140 = scmp.eq.s32.totalorder %s25, 0
      %p141 = por %p139, %p140
      %p142 = scmp.ne.s32.totalorder %s131, %s134
      %p143 = scmp.eq.s32.totalorder %s30, 3
      %p144 = por %p142, %p143
      %p145 = scmp.ne.s32.totalorder %s134, %s135
      %p146 = scmp.eq.s32.totalorder %s30, 0
      %p147 = por %p145, %p146
      %p148 = scmp.ne.s32.totalorder %s134, %s135
      %p149 = scmp.eq.s32.totalorder %s31, 3
      %p150 = por %p148, %p149
      %p152 = scmp.ne.s32.totalorder %s135, %s151
      %p153 = scmp.eq.s32.totalorder %s31, 0
      %p154 = por %p152, %p153
      %s155 = ssub.s32 %s32, %s44
      %p156 = scmp.eq.s32.totalorder %s155, 0
      %s158 = sadd.s32 %s157, 1
      %s159 = scalar_select %p156, %s157, %s158
      %p162 = pneg %p156
      %p163 = scmp.eq.s32.totalorder %s25, 3
      %p164 = por %p162, %p163
      %p165 = scmp.ne.s32.totalorder %s157, %s160
      %p166 = scmp.eq.s32.totalorder %s25, 0
      %p167 = por %p165, %p166
      %p168 = scmp.ne.s32.totalorder %s157, %s160
      %p169 = scmp.eq.s32.totalorder %s30, 3
      %p170 = por %p168, %p169
      %p171 = scmp.ne.s32.totalorder %s160, %s161
      %p172 = scmp.eq.s32.totalorder %s30, 0
      %p173 = por %p171, %p172
      %p174 = scmp.ne.s32.totalorder %s160, %s161
      %p175 = scmp.eq.s32.totalorder %s31, 3
      %p176 = por %p174, %p175
      %p178 = scmp.ne.s32.totalorder %s161, %s177
      %p179 = scmp.eq.s32.totalorder %s31, 0
      %p180 = por %p178, %p179
      %s181 = ssub.s32 %s32, %s44
      %p182 = scmp.eq.s32.totalorder %s181, 0
      %s184 = sadd.s32 %s183, 1
      %s185 = scalar_select %p182, %s183, %s184
      %p188 = pneg %p182
      %p189 = scmp.eq.s32.totalorder %s25, 3
      %p190 = por %p188, %p189
      %p191 = scmp.ne.s32.totalorder %s183, %s186
      %p192 = scmp.eq.s32.totalorder %s25, 0
      %p193 = por %p191, %p192
      %p194 = scmp.ne.s32.totalorder %s183, %s186
      %p195 = scmp.eq.s32.totalorder %s30, 3
      %p196 = por %p194, %p195
      %p197 = scmp.ne.s32.totalorder %s186, %s187
      %p198 = scmp.eq.s32.totalorder %s30, 0
      %p199 = por %p197, %p198
      %p200 = scmp.ne.s32.totalorder %s186, %s187
      %p201 = scmp.eq.s32.totalorder %s31, 3
      %p202 = por %p200, %p201
      %p204 = scmp.ne.s32.totalorder %s187, %s203
      %p205 = scmp.eq.s32.totalorder %s31, 0
      %p206 = por %p204, %p205
      %s207 = ssub.s32 %s32, %s44
      %p208 = scmp.eq.s32.totalorder %s207, 0
      %s210 = sadd.s32 %s209, 1
      %s211 = scalar_select %p208, %s209, %s210
      %p214 = pneg %p208
      %p215 = scmp.eq.s32.totalorder %s25, 3
      %p216 = por %p214, %p215
      %p217 = scmp.ne.s32.totalorder %s209, %s212
      %p218 = scmp.eq.s32.totalorder %s25, 0
      %p219 = por %p217, %p218
      %p220 = scmp.ne.s32.totalorder %s209, %s212
      %p221 = scmp.eq.s32.totalorder %s30, 3
      %p222 = por %p220, %p221
      %p223 = scmp.ne.s32.totalorder %s212, %s213
      %p224 = scmp.eq.s32.totalorder %s30, 0
      %p225 = por %p223, %p224
      %p226 = scmp.ne.s32.totalorder %s212, %s213
      %p227 = scmp.eq.s32.totalorder %s31, 3
      %p228 = por %p226, %p227
      %p230 = scmp.ne.s32.totalorder %s213, %s229
      %p231 = scmp.eq.s32.totalorder %s31, 0
      %p232 = por %p230, %p231
      %s233 = ssub.s32 %s32, %s44
      %p234 = scmp.eq.s32.totalorder %s233, 0
      %s236 = sadd.s32 %s235, 1
      %s237 = scalar_select %p234, %s235, %s236
      %p240 = pneg %p234
      %p241 = scmp.eq.s32.totalorder %s25, 3
      %p242 = por %p240, %p241
      %p243 = scmp.ne.s32.totalorder %s235, %s238
      %p244 = scmp.eq.s32.totalorder %s25, 0
      %p245 = por %p243, %p244
      %p246 = scmp.ne.s32.totalorder %s235, %s238
      %p247 = scmp.eq.s32.totalorder %s30, 3
      %p248 = por %p246, %p247
      %p249 = scmp.ne.s32.totalorder %s238, %s239
      %p250 = scmp.eq.s32.totalorder %s30, 0
      %p251 = por %p249, %p250
      %p252 = scmp.ne.s32.totalorder %s238, %s239
      %p253 = scmp.eq.s32.totalorder %s31, 3
      %p254 = por %p252, %p253
      %p256 = scmp.ne.s32.totalorder %s239, %s255
      %p257 = scmp.eq.s32.totalorder %s31, 0
      %p258 = por %p256, %p257
      %p259 = scmp.le.s32.totalorder 1, %s25
      %p260 = scmp.lt.s32.totalorder %s25, 5
      %p261 = pnand %p259, %p260
      %p262 = pneg %p261
      // Predicated region
      $region9: #{tpu_custom_call.1} parent=5 // pred_check
        _
      $region10: #{tpu_custom_call.1} parent=5 // pred_check_branch
        %264 = sbr.rel (%p261) target = $region12
      $region11: #{tpu_custom_call.1} parent=5 // pred_region
        %s265 = ssub.s32 %s25, 1
      $region12: #{tpu_custom_call.1} parent=5 // pred_fallthru
        _
      %p266 = scmp.lt.s32.totalorder %s25, 4
      // Predicated region
      $region13: #{tpu_custom_call.1} parent=5 // pred_check
        %p267 = pneg %p266
      $region14: #{tpu_custom_call.1} parent=5 // pred_check_branch
        %269 = sbr.rel (%p267) target = $region16
      $region15: #{tpu_custom_call.1} parent=5 // pred_region
        // Predicated region
        $region17: #{tpu_custom_call.1} parent=15 // pred_check
          %p270 = pneg %p57
        $region18: #{tpu_custom_call.1} parent=15 // pred_check_branch
          %272 = sbr.rel (%p270) target = $region20
        $region19: #{tpu_custom_call.1} parent=15 // pred_region
          %s273 = sand.u32 %s47, 1
          %s274 = scalar_lea.sflag [#allocation4], %s273
          %s275 = sand.u32 %s47, 1
          %s276 = smul.addr %s275, 16
          %s277 = scalar_lea.vmem [#allocation3], %s276
          %s278 = smul.u32 2, %s33
          %s280 = ssub.s32 256, 256
          %281 = vsyncadd %s274, %s280
          %s282 = smul.addr %s278, 128
          %s283 = scalar_lea.hbm %s0, %s282
          %s285 = sshll.u32 %s277, 4
          %s286 = int_to_ptr.vmem [resolvable:$true] %s285
          %288 = dma.hbm_to_vmem [thread:$0]  %s283, 256, %s286, %s274
        $region20: #{tpu_custom_call.1} parent=15 // pred_fallthru
          _
        // Predicated region
        $region21: #{tpu_custom_call.1} parent=15 // pred_check
          %p289 = pneg %p85
        $region22: #{tpu_custom_call.1} parent=15 // pred_check_branch
          %291 = sbr.rel (%p289) target = $region24
        $region23: #{tpu_custom_call.1} parent=15 // pred_region
          %s292 = sand.u32 %s25, 1
          %s293 = scalar_lea.sflag [#allocation7], %s292
          %s294 = sand.u32 %s75, 1
          %s295 = smul.addr %s294, 256
          %s296 = scalar_lea.vmem [#allocation6], %s295
          %s297 = smul.u32 16, %s32
          %s298 = smul.u32 2, %s33
          %s300 = ssub.s32 4096, 4096
          %301 = vsyncadd %s293, %s300
          %s302 = smul.addr %s297, 4
          %s303 = sadd.s32 %s298, %s302
          %s304 = smul.addr %s303, 128
          %s305 = scalar_lea.hbm %s1, %s304
          %s306 = sshll.u32 %s296, 4
          %s307 = int_to_ptr.vmem [resolvable:$true] %s306
          %312 = dma.hbm_to_vmem [thread:$0]  %s305, 4096, %s307, %s293, 512, 256, 16
        $region24: #{tpu_custom_call.1} parent=15 // pred_fallthru
          _
        // Predicated region
        $region25: #{tpu_custom_call.1} parent=15 // pred_check
          %p313 = pneg %p113
        $region26: #{tpu_custom_call.1} parent=15 // pred_check_branch
          %315 = sbr.rel (%p313) target = $region28
        $region27: #{tpu_custom_call.1} parent=15 // pred_region
          %s316 = sand.u32 %s25, 1
          %s317 = scalar_lea.sflag [#allocation7], %s316
          %s318 = sand.u32 %s103, 1
          %s319 = smul.addr %s318, 256
          %s320 = scalar_lea.vmem [#allocation8], %s319
          %s321 = smul.u32 16, %s32
          %s322 = smul.u32 2, %s33
          %s324 = ssub.s32 4096, 4096
          %325 = vsyncadd %s317, %s324
          %s326 = smul.addr %s321, 4
          %s327 = sadd.s32 %s322, %s326
          %s328 = smul.addr %s327, 128
          %s329 = scalar_lea.hbm %s2, %s328
          %s330 = sshll.u32 %s320, 4
          %s331 = int_to_ptr.vmem [resolvable:$true] %s330
          %336 = dma.hbm_to_vmem [thread:$0]  %s329, 4096, %s331, %s317, 512, 256, 16
        $region28: #{tpu_custom_call.1} parent=15 // pred_fallthru
          _
        // Predicated region
        $region29: #{tpu_custom_call.1} parent=15 // pred_check
          %p337 = pneg %p141
        $region30: #{tpu_custom_call.1} parent=15 // pred_check_branch
          %339 = sbr.rel (%p337) target = $region32
        $region31: #{tpu_custom_call.1} parent=15 // pred_region
          %s340 = sand.u32 %s131, 1
          %s341 = scalar_lea.sflag [#allocation10], %s340
          %s342 = sand.u32 %s131, 1
          %s343 = smul.addr %s342, 256
          %s344 = scalar_lea.vmem [#allocation9], %s343
          %s345 = smul.u32 16, %s32
          %s346 = smul.u32 2, %s33
          %s348 = ssub.s32 4096, 4096
          %349 = vsyncadd %s341, %s348
          %s350 = smul.addr %s345, 4
          %s351 = sadd.s32 %s346, %s350
          %s352 = smul.addr %s351, 128
          %s353 = scalar_lea.hbm %s3, %s352
          %s354 = sshll.u32 %s344, 4
          %s355 = int_to_ptr.vmem [resolvable:$true] %s354
          %360 = dma.hbm_to_vmem [thread:$0]  %s353, 4096, %s355, %s341, 512, 256, 16
        $region32: #{tpu_custom_call.1} parent=15 // pred_fallthru
          _
        // Predicated region
        $region33: #{tpu_custom_call.1} parent=15 // pred_check
          %p361 = pneg %p167
        $region34: #{tpu_custom_call.1} parent=15 // pred_check_branch
          %363 = sbr.rel (%p361) target = $region36
        $region35: #{tpu_custom_call.1} parent=15 // pred_region
          %p364 = scmp.lt.s32.totalorder %s32, 1
          %s365 = scalar_select %p364, %s32, 1
          %s366 = scalar_lea.vmem %s4, %s365
        $region36: #{tpu_custom_call.1} parent=15 // pred_fallthru
          _
        // Predicated region
        $region37: #{tpu_custom_call.1} parent=15 // pred_check
          %p367 = pneg %p193
        $region38: #{tpu_custom_call.1} parent=15 // pred_check_branch
          %369 = sbr.rel (%p367) target = $region40
        $region39: #{tpu_custom_call.1} parent=15 // pred_region
          %p370 = scmp.lt.s32.totalorder %s32, 1
          %s371 = scalar_select %p370, %s32, 1
          %s372 = scalar_lea.vmem %s5, %s371
        $region40: #{tpu_custom_call.1} parent=15 // pred_fallthru
          _
        // Predicated region
        $region41: #{tpu_custom_call.1} parent=15 // pred_check
          %p373 = pneg %p219
        $region42: #{tpu_custom_call.1} parent=15 // pred_check_branch
          %375 = sbr.rel (%p373) target = $region44
        $region43: #{tpu_custom_call.1} parent=15 // pred_region
          %p376 = scmp.lt.s32.totalorder %s32, 1
          %s377 = scalar_select %p376, %s32, 1
          %s378 = scalar_lea.vmem %s6, %s377
        $region44: #{tpu_custom_call.1} parent=15 // pred_fallthru
          _
      $region16: #{tpu_custom_call.1} parent=5 // pred_fallthru
        _
      %p379 = scmp.le.s32.totalorder 1, %s25
      %p380 = scmp.lt.s32.totalorder %s25, 5
      %p381 = pnand %p379, %p380
      %p382 = pneg %p381
      // Predicated region
      $region45: #{tpu_custom_call.1} parent=5 // pred_check
        _
      $region46: #{tpu_custom_call.1} parent=5 // pred_check_branch
        %384 = sbr.rel (%p381) target = $region48
      $region47: #{tpu_custom_call.1} parent=5 // pred_region
        %s385 = ssub.s32 %s25, 1
        %s386 = sand.u32 %s50, 1
        %s387 = scalar_lea.sflag [#allocation4], %s386
        %s388 = sand.u32 %s50, 1
        %s389 = smul.addr %s388, 16
        %s390 = scalar_lea.vmem [#allocation3], %s389
        // Predicated region
        $region49: #{tpu_custom_call.1} parent=47 // pred_check
          %p391 = pneg %p63
        $region50: #{tpu_custom_call.1} parent=47 // pred_check_branch
          %393 = sbr.rel (%p391) target = $region52
        $region51: #{tpu_custom_call.1} parent=47 // pred_region
          %394 = dma.done %s387, 256
        $region52: #{tpu_custom_call.1} parent=47 // pred_fallthru
          _
        %s395 = sand.u32 %s30, 1
        %s396 = scalar_lea.sflag [#allocation7], %s395
        %s397 = sand.u32 %s78, 1
        %s398 = smul.addr %s397, 256
        %s399 = scalar_lea.vmem [#allocation6], %s398
        // Predicated region
        $region53: #{tpu_custom_call.1} parent=47 // pred_check
          %p400 = pneg %p91
        $region54: #{tpu_custom_call.1} parent=47 // pred_check_branch
          %402 = sbr.rel (%p400) target = $region56
        $region55: #{tpu_custom_call.1} parent=47 // pred_region
          %403 = dma.done %s396, 4096
        $region56: #{tpu_custom_call.1} parent=47 // pred_fallthru
          _
        %s404 = sand.u32 %s30, 1
        %s405 = scalar_lea.sflag [#allocation7], %s404
        %s406 = sand.u32 %s106, 1
        %s407 = smul.addr %s406, 256
        %s408 = scalar_lea.vmem [#allocation8], %s407
        // Predicated region
        $region57: #{tpu_custom_call.1} parent=47 // pred_check
          %p409 = pneg %p119
        $region58: #{tpu_custom_call.1} parent=47 // pred_check_branch
          %411 = sbr.rel (%p409) target = $region60
        $region59: #{tpu_custom_call.1} parent=47 // pred_region
          %412 = dma.done %s405, 4096
        $region60: #{tpu_custom_call.1} parent=47 // pred_fallthru
          _
        %s413 = sand.u32 %s134, 1
        %s414 = scalar_lea.sflag [#allocation10], %s413
        %s415 = sand.u32 %s134, 1
        %s416 = smul.addr %s415, 256
        %s417 = scalar_lea.vmem [#allocation9], %s416
        // Predicated region
        $region61: #{tpu_custom_call.1} parent=47 // pred_check
          %p418 = pneg %p147
        $region62: #{tpu_custom_call.1} parent=47 // pred_check_branch
          %420 = sbr.rel (%p418) target = $region64
        $region63: #{tpu_custom_call.1} parent=47 // pred_region
          %421 = dma.done %s414, 4096
        $region64: #{tpu_custom_call.1} parent=47 // pred_fallthru
          _
        %s422 = sand.u32 %s50, 1
        %s423 = scalar_lea.sflag [#allocation4], %s422
        %s424 = sand.u32 %s50, 1
        %s425 = smul.addr %s424, 16
        %s426 = scalar_lea.vmem [#allocation3], %s425
        %p427 = pneg %p63
        %p428 = pneg %p60
        %s429 = sand.u32 %s30, 1
        %s430 = scalar_lea.sflag [#allocation7], %s429
        %s431 = sand.u32 %s78, 1
        %s432 = smul.addr %s431, 256
        %s433 = scalar_lea.vmem [#allocation6], %s432
        %p434 = pneg %p91
        %p435 = pneg %p88
        %s436 = sand.u32 %s30, 1
        %s437 = scalar_lea.sflag [#allocation7], %s436
        %s438 = sand.u32 %s106, 1
        %s439 = smul.addr %s438, 256
        %s440 = scalar_lea.vmem [#allocation8], %s439
        %p441 = pneg %p119
        %p442 = pneg %p116
        %s443 = sand.u32 %s134, 1
        %s444 = scalar_lea.sflag [#allocation10], %s443
        %s445 = sand.u32 %s134, 1
        %s446 = smul.addr %s445, 256
        %s447 = scalar_lea.vmem [#allocation9], %s446
        %p448 = pneg %p147
        %p449 = pneg %p144
        %p450 = scmp.lt.s32.totalorder %s34, 1
        %s451 = scalar_select %p450, %s34, 1
        %s452 = scalar_lea.vmem %s4, %s451
        %p453 = pneg %p173
        %p454 = pneg %p170
        %p455 = scmp.lt.s32.totalorder %s34, 1
        %s456 = scalar_select %p455, %s34, 1
        %s457 = scalar_lea.vmem %s5, %s456
        %p458 = pneg %p199
        %p459 = pneg %p196
        %p460 = scmp.lt.s32.totalorder %s34, 1
        %s461 = scalar_select %p460, %s34, 1
        %s462 = scalar_lea.vmem %s6, %s461
        %p463 = pneg %p225
        %p464 = pneg %p222
        %p465 = pneg %p251
        %p466 = pneg %p248
        %s467 = sand.u32 %s238, 1
        %s468 = scalar_lea.sflag [#allocation5], %s467
        %s469 = sand.u32 %s238, 1
        %s470 = smul.addr %s469, 8
        %s471 = scalar_lea.vmem [#allocation11], %s470
        %s472 = smul.u32 2, %s35
        %s473 = smul.u32 16, %s34
        %s474 = smul.u32 2, %s35
        %s475 = smul.u32 16, %s34
        %s476 = smul.u32 2, %s35
        %s477 = smul.u32 16, %s34
        %s478 = smul.u32 2, %s35
        %p479 = scmp.lt.s32.totalorder %s34, 1
        %s480 = scalar_select %p479, %s34, 1
        %s481 = scalar_lea.vmem %s4, %s480
        %p482 = scmp.lt.s32.totalorder %s34, 1
        %s483 = scalar_select %p482, %s34, 1
        %s484 = scalar_lea.vmem %s5, %s483
        %p485 = scmp.lt.s32.totalorder %s34, 1
        %s486 = scalar_select %p485, %s34, 1
        %s487 = scalar_lea.vmem %s6, %s486
        %p488 = scmp.eq.s32.totalorder %s35, 0
        // Predicated region
        $region65: #{tpu_custom_call.1} parent=47 // pred_check
          %p489 = pneg %p488
        $region66: #{tpu_custom_call.1} parent=47 // pred_check_branch
          %491 = sbr.rel (%p489) target = $region68
        $region67: #{tpu_custom_call.1} parent=47 // pred_region
          %492 = vst [vmem:[#allocation2] sm:$0xff] 0.0
        $region68: #{tpu_custom_call.1} parent=47 // pred_fallthru
          _
        %v493 = vld [vmem:[%s399] sm:$0xff]
        %v494 = vld [vmem:[%s399 + $0x8] sm:$0xff]
        %v495 = vld [vmem:[%s399 + $0x10] sm:$0xff]
        %v496 = vld [vmem:[%s399 + $0x18] sm:$0xff]
        %v497 = vld [vmem:[%s399 + $0x20] sm:$0xff]
        %v498 = vld [vmem:[%s399 + $0x28] sm:$0xff]
        %v499 = vld [vmem:[%s399 + $0x30] sm:$0xff]
        %v500 = vld [vmem:[%s399 + $0x38] sm:$0xff]
        %v501 = vld [vmem:[%s399 + $0x40] sm:$0xff]
        %v502 = vld [vmem:[%s399 + $0x48] sm:$0xff]
        %v503 = vld [vmem:[%s399 + $0x50] sm:$0xff]
        %v504 = vld [vmem:[%s399 + $0x58] sm:$0xff]
        %v505 = vld [vmem:[%s399 + $0x60] sm:$0xff]
        %v506 = vld [vmem:[%s399 + $0x68] sm:$0xff]
        %v507 = vld [vmem:[%s399 + $0x70] sm:$0xff]
        %v508 = vld [vmem:[%s399 + $0x78] sm:$0xff]
        %v509 = vld [vmem:[%s399 + $0x80] sm:$0xff]
        %v510 = vld [vmem:[%s399 + $0x88] sm:$0xff]
        %v511 = vld [vmem:[%s399 + $0x90] sm:$0xff]
        %v512 = vld [vmem:[%s399 + $0x98] sm:$0xff]
        %v513 = vld [vmem:[%s399 + $0xa0] sm:$0xff]
        %v514 = vld [vmem:[%s399 + $0xa8] sm:$0xff]
        %v515 = vld [vmem:[%s399 + $0xb0] sm:$0xff]
        %v516 = vld [vmem:[%s399 + $0xb8] sm:$0xff]
        %v517 = vld [vmem:[%s399 + $0xc0] sm:$0xff]
        %v518 = vld [vmem:[%s399 + $0xc8] sm:$0xff]
        %v519 = vld [vmem:[%s399 + $0xd0] sm:$0xff]
        %v520 = vld [vmem:[%s399 + $0xd8] sm:$0xff]
        %v521 = vld [vmem:[%s399 + $0xe0] sm:$0xff]
        %v522 = vld [vmem:[%s399 + $0xe8] sm:$0xff]
        %v523 = vld [vmem:[%s399 + $0xf0] sm:$0xff]
        %v524 = vld [vmem:[%s399 + $0xf8] sm:$0xff]
        %v525 = vld [vmem:[%s408] sm:$0xff]
        %v526 = vld [vmem:[%s408 + $0x8] sm:$0xff]
        %v527 = vld [vmem:[%s408 + $0x10] sm:$0xff]
        %v528 = vld [vmem:[%s408 + $0x18] sm:$0xff]
        %v529 = vld [vmem:[%s408 + $0x20] sm:$0xff]
        %v530 = vld [vmem:[%s408 + $0x28] sm:$0xff]
        %v531 = vld [vmem:[%s408 + $0x30] sm:$0xff]
        %v532 = vld [vmem:[%s408 + $0x38] sm:$0xff]
        %v533 = vld [vmem:[%s408 + $0x40] sm:$0xff]
        %v534 = vld [vmem:[%s408 + $0x48] sm:$0xff]
        %v535 = vld [vmem:[%s408 + $0x50] sm:$0xff]
        %v536 = vld [vmem:[%s408 + $0x58] sm:$0xff]
        %v537 = vld [vmem:[%s408 + $0x60] sm:$0xff]
        %v538 = vld [vmem:[%s408 + $0x68] sm:$0xff]
        %v539 = vld [vmem:[%s408 + $0x70] sm:$0xff]
        %v540 = vld [vmem:[%s408 + $0x78] sm:$0xff]
        %v541 = vld [vmem:[%s408 + $0x80] sm:$0xff]
        %v542 = vld [vmem:[%s408 + $0x88] sm:$0xff]
        %v543 = vld [vmem:[%s408 + $0x90] sm:$0xff]
        %v544 = vld [vmem:[%s408 + $0x98] sm:$0xff]
        %v545 = vld [vmem:[%s408 + $0xa0] sm:$0xff]
        %v546 = vld [vmem:[%s408 + $0xa8] sm:$0xff]
        %v547 = vld [vmem:[%s408 + $0xb0] sm:$0xff]
        %v548 = vld [vmem:[%s408 + $0xb8] sm:$0xff]
        %v549 = vld [vmem:[%s408 + $0xc0] sm:$0xff]
        %v550 = vld [vmem:[%s408 + $0xc8] sm:$0xff]
        %v551 = vld [vmem:[%s408 + $0xd0] sm:$0xff]
        %v552 = vld [vmem:[%s408 + $0xd8] sm:$0xff]
        %v553 = vld [vmem:[%s408 + $0xe0] sm:$0xff]
        %v554 = vld [vmem:[%s408 + $0xe8] sm:$0xff]
        %v555 = vld [vmem:[%s408 + $0xf0] sm:$0xff]
        %v556 = vld [vmem:[%s408 + $0xf8] sm:$0xff]
        %vm557 = vcmp.gt.f32.partialorder %v525, 20.0
        %vm558 = vcmp.gt.f32.partialorder %v526, 20.0
        %vm559 = vcmp.gt.f32.partialorder %v527, 20.0
        %vm560 = vcmp.gt.f32.partialorder %v528, 20.0
        %vm561 = vcmp.gt.f32.partialorder %v529, 20.0
        %vm562 = vcmp.gt.f32.partialorder %v530, 20.0
        %vm563 = vcmp.gt.f32.partialorder %v531, 20.0
        %vm564 = vcmp.gt.f32.partialorder %v532, 20.0
        %vm565 = vcmp.gt.f32.partialorder %v533, 20.0
        %vm566 = vcmp.gt.f32.partialorder %v534, 20.0
        %vm567 = vcmp.gt.f32.partialorder %v535, 20.0
        %vm568 = vcmp.gt.f32.partialorder %v536, 20.0
        %vm569 = vcmp.gt.f32.partialorder %v537, 20.0
        %vm570 = vcmp.gt.f32.partialorder %v538, 20.0
        %vm571 = vcmp.gt.f32.partialorder %v539, 20.0
        %vm572 = vcmp.gt.f32.partialorder %v540, 20.0
        %vm573 = vcmp.gt.f32.partialorder %v541, 20.0
        %vm574 = vcmp.gt.f32.partialorder %v542, 20.0
        %vm575 = vcmp.gt.f32.partialorder %v543, 20.0
        %vm576 = vcmp.gt.f32.partialorder %v544, 20.0
        %vm577 = vcmp.gt.f32.partialorder %v545, 20.0
        %vm578 = vcmp.gt.f32.partialorder %v546, 20.0
        %vm579 = vcmp.gt.f32.partialorder %v547, 20.0
        %vm580 = vcmp.gt.f32.partialorder %v548, 20.0
        %vm581 = vcmp.gt.f32.partialorder %v549, 20.0
        %vm582 = vcmp.gt.f32.partialorder %v550, 20.0
        %vm583 = vcmp.gt.f32.partialorder %v551, 20.0
        %vm584 = vcmp.gt.f32.partialorder %v552, 20.0
        %vm585 = vcmp.gt.f32.partialorder %v553, 20.0
        %vm586 = vcmp.gt.f32.partialorder %v554, 20.0
        %vm587 = vcmp.gt.f32.partialorder %v555, 20.0
        %vm588 = vcmp.gt.f32.partialorder %v556, 20.0
        %v589 = vmin.f32 %v525, 20.0
        %v590 = vmin.f32 %v526, 20.0
        %v591 = vmin.f32 %v527, 20.0
        %v592 = vmin.f32 %v528, 20.0
        %v593 = vmin.f32 %v529, 20.0
        %v594 = vmin.f32 %v530, 20.0
        %v595 = vmin.f32 %v531, 20.0
        %v596 = vmin.f32 %v532, 20.0
        %v597 = vmin.f32 %v533, 20.0
        %v598 = vmin.f32 %v534, 20.0
        %v599 = vmin.f32 %v535, 20.0
        %v600 = vmin.f32 %v536, 20.0
        %v601 = vmin.f32 %v537, 20.0
        %v602 = vmin.f32 %v538, 20.0
        %v603 = vmin.f32 %v539, 20.0
        %v604 = vmin.f32 %v540, 20.0
        %v605 = vmin.f32 %v541, 20.0
        %v606 = vmin.f32 %v542, 20.0
        %v607 = vmin.f32 %v543, 20.0
        %v608 = vmin.f32 %v544, 20.0
        %v609 = vmin.f32 %v545, 20.0
        %v610 = vmin.f32 %v546, 20.0
        %v611 = vmin.f32 %v547, 20.0
        %v612 = vmin.f32 %v548, 20.0
        %v613 = vmin.f32 %v549, 20.0
        %v614 = vmin.f32 %v550, 20.0
        %v615 = vmin.f32 %v551, 20.0
        %v616 = vmin.f32 %v552, 20.0
        %v617 = vmin.f32 %v553, 20.0
        %v618 = vmin.f32 %v554, 20.0
        %v619 = vmin.f32 %v555, 20.0
        %v620 = vmin.f32 %v556, 20.0
        %v621 = vmul.f32 %v589, 1.442695
        %v622 = vpow.pop %v621
        %v623 = vmul.f32 %v590, 1.442695
        %v624 = vpow.pop %v623
        %v625 = vmul.f32 %v591, 1.442695
        %v626 = vpow.pop %v625
        %v627 = vmul.f32 %v592, 1.442695
        %v628 = vpow.pop %v627
        %v629 = vmul.f32 %v593, 1.442695
        %v630 = vpow.pop %v629
        %v631 = vmul.f32 %v594, 1.442695
        %v632 = vpow.pop %v631
        %v633 = vmul.f32 %v595, 1.442695
        %v634 = vpow.pop %v633
        %v635 = vmul.f32 %v596, 1.442695
        %v636 = vpow.pop %v635
        %v637 = vmul.f32 %v597, 1.442695
        %v638 = vpow.pop %v637
        %v639 = vmul.f32 %v598, 1.442695
        %v640 = vpow.pop %v639
        %v641 = vmul.f32 %v599, 1.442695
        %v642 = vpow.pop %v641
        %v643 = vmul.f32 %v600, 1.442695
        %v644 = vpow.pop %v643
        %v645 = vmul.f32 %v601, 1.442695
        %v646 = vpow.pop %v645
        %v647 = vmul.f32 %v602, 1.442695
        %v648 = vpow.pop %v647
        %v649 = vmul.f32 %v603, 1.442695
        %v650 = vpow.pop %v649
        %v651 = vmul.f32 %v604, 1.442695
        %v652 = vpow.pop %v651
        %v653 = vmul.f32 %v605, 1.442695
        %v654 = vpow.pop %v653
        %v655 = vmul.f32 %v606, 1.442695
        %v656 = vpow.pop %v655
        %v657 = vmul.f32 %v607, 1.442695
        %v658 = vpow.pop %v657
        %v659 = vmul.f32 %v608, 1.442695
        %v660 = vpow.pop %v659
        %v661 = vmul.f32 %v609, 1.442695
        %v662 = vpow.pop %v661
        %v663 = vmul.f32 %v610, 1.442695
        %v664 = vpow.pop %v663
        %v665 = vmul.f32 %v611, 1.442695
        %v666 = vpow.pop %v665
        %v667 = vmul.f32 %v612, 1.442695
        %v668 = vpow.pop %v667
        %v669 = vmul.f32 %v613, 1.442695
        %v670 = vpow.pop %v669
        %v671 = vmul.f32 %v614, 1.442695
        %v672 = vpow.pop %v671
        %v673 = vmul.f32 %v615, 1.442695
        %v674 = vpow.pop %v673
        %v675 = vmul.f32 %v616, 1.442695
        %v676 = vpow.pop %v675
        %v677 = vmul.f32 %v617, 1.442695
        %v678 = vpow.pop %v677
        %v679 = vmul.f32 %v618, 1.442695
        %v680 = vpow.pop %v679
        %v681 = vmul.f32 %v619, 1.442695
        %v682 = vpow.pop %v681
        %v683 = vmul.f32 %v620, 1.442695
        %v684 = vpow.pop %v683
        %v685 = vadd.f32 %v622, 1.0
        %v686 = vlog2.pop %v685
        %v687 = vmul.f32 %v686, 0.6931472
        %v688 = vmul.f32 -0.5, %v622
        %v689 = vadd.f32 %v688, 1.0
        %v690 = vmul.f32 %v689, %v622
        %v691 = vand.u32 2147483647, %v622
        %vm692 = vcmp.lt.f32.partialorder %v691, 0.0004427343
        %v693 = vsel %vm692, %v690, %v687
        %v694 = vadd.f32 %v624, 1.0
        %v695 = vlog2.pop %v694
        %v696 = vmul.f32 %v695, 0.6931472
        %v697 = vmul.f32 -0.5, %v624
        %v698 = vadd.f32 %v697, 1.0
        %v699 = vmul.f32 %v698, %v624
        %v700 = vand.u32 2147483647, %v624
        %vm701 = vcmp.lt.f32.partialorder %v700, 0.0004427343
        %v702 = vsel %vm701, %v699, %v696
        %v703 = vadd.f32 %v626, 1.0
        %v704 = vlog2.pop %v703
        %v705 = vmul.f32 %v704, 0.6931472
        %v706 = vmul.f32 -0.5, %v626
        %v707 = vadd.f32 %v706, 1.0
        %v708 = vmul.f32 %v707, %v626
        %v709 = vand.u32 2147483647, %v626
        %vm710 = vcmp.lt.f32.partialorder %v709, 0.0004427343
        %v711 = vsel %vm710, %v708, %v705
        %v712 = vadd.f32 %v628, 1.0
        %v713 = vlog2.pop %v712
        %v714 = vmul.f32 %v713, 0.6931472
        %v715 = vmul.f32 -0.5, %v628
        %v716 = vadd.f32 %v715, 1.0
        %v717 = vmul.f32 %v716, %v628
        %v718 = vand.u32 2147483647, %v628
        %vm719 = vcmp.lt.f32.partialorder %v718, 0.0004427343
        %v720 = vsel %vm719, %v717, %v714
        %v721 = vadd.f32 %v630, 1.0
        %v722 = vlog2.pop %v721
        %v723 = vmul.f32 %v722, 0.6931472
        %v724 = vmul.f32 -0.5, %v630
        %v725 = vadd.f32 %v724, 1.0
        %v726 = vmul.f32 %v725, %v630
        %v727 = vand.u32 2147483647, %v630
        %vm728 = vcmp.lt.f32.partialorder %v727, 0.0004427343
        %v729 = vsel %vm728, %v726, %v723
        %v730 = vadd.f32 %v632, 1.0
        %v731 = vlog2.pop %v730
        %v732 = vmul.f32 %v731, 0.6931472
        %v733 = vmul.f32 -0.5, %v632
        %v734 = vadd.f32 %v733, 1.0
        %v735 = vmul.f32 %v734, %v632
        %v736 = vand.u32 2147483647, %v632
        %vm737 = vcmp.lt.f32.partialorder %v736, 0.0004427343
        %v738 = vsel %vm737, %v735, %v732
        %v739 = vadd.f32 %v634, 1.0
        %v740 = vlog2.pop %v739
        %v741 = vmul.f32 %v740, 0.6931472
        %v742 = vmul.f32 -0.5, %v634
        %v743 = vadd.f32 %v742, 1.0
        %v744 = vmul.f32 %v743, %v634
        %v745 = vand.u32 2147483647, %v634
        %vm746 = vcmp.lt.f32.partialorder %v745, 0.0004427343
        %v747 = vsel %vm746, %v744, %v741
        %v748 = vadd.f32 %v636, 1.0
        %v749 = vlog2.pop %v748
        %v750 = vmul.f32 %v749, 0.6931472
        %v751 = vmul.f32 -0.5, %v636
        %v752 = vadd.f32 %v751, 1.0
        %v753 = vmul.f32 %v752, %v636
        %v754 = vand.u32 2147483647, %v636
        %vm755 = vcmp.lt.f32.partialorder %v754, 0.0004427343
        %v756 = vsel %vm755, %v753, %v750
        %v757 = vadd.f32 %v638, 1.0
        %v758 = vlog2.pop %v757
        %v759 = vmul.f32 %v758, 0.6931472
        %v760 = vmul.f32 -0.5, %v638
        %v761 = vadd.f32 %v760, 1.0
        %v762 = vmul.f32 %v761, %v638
        %v763 = vand.u32 2147483647, %v638
        %vm764 = vcmp.lt.f32.partialorder %v763, 0.0004427343
        %v765 = vsel %vm764, %v762, %v759
        %v766 = vadd.f32 %v640, 1.0
        %v767 = vlog2.pop %v766
        %v768 = vmul.f32 %v767, 0.6931472
        %v769 = vmul.f32 -0.5, %v640
        %v770 = vadd.f32 %v769, 1.0
        %v771 = vmul.f32 %v770, %v640
        %v772 = vand.u32 2147483647, %v640
        %vm773 = vcmp.lt.f32.partialorder %v772, 0.0004427343
        %v774 = vsel %vm773, %v771, %v768
        %v775 = vadd.f32 %v642, 1.0
        %v776 = vlog2.pop %v775
        %v777 = vmul.f32 %v776, 0.6931472
        %v778 = vmul.f32 -0.5, %v642
        %v779 = vadd.f32 %v778, 1.0
        %v780 = vmul.f32 %v779, %v642
        %v781 = vand.u32 2147483647, %v642
        %vm782 = vcmp.lt.f32.partialorder %v781, 0.0004427343
        %v783 = vsel %vm782, %v780, %v777
        %v784 = vadd.f32 %v644, 1.0
        %v785 = vlog2.pop %v784
        %v786 = vmul.f32 %v785, 0.6931472
        %v787 = vmul.f32 -0.5, %v644
        %v788 = vadd.f32 %v787, 1.0
        %v789 = vmul.f32 %v788, %v644
        %v790 = vand.u32 2147483647, %v644
        %vm791 = vcmp.lt.f32.partialorder %v790, 0.0004427343
        %v792 = vsel %vm791, %v789, %v786
        %v793 = vadd.f32 %v646, 1.0
        %v794 = vlog2.pop %v793
        %v795 = vmul.f32 %v794, 0.6931472
        %v796 = vmul.f32 -0.5, %v646
        %v797 = vadd.f32 %v796, 1.0
        %v798 = vmul.f32 %v797, %v646
        %v799 = vand.u32 2147483647, %v646
        %vm800 = vcmp.lt.f32.partialorder %v799, 0.0004427343
        %v801 = vsel %vm800, %v798, %v795
        %v802 = vadd.f32 %v648, 1.0
        %v803 = vlog2.pop %v802
        %v804 = vmul.f32 %v803, 0.6931472
        %v805 = vmul.f32 -0.5, %v648
        %v806 = vadd.f32 %v805, 1.0
        %v807 = vmul.f32 %v806, %v648
        %v808 = vand.u32 2147483647, %v648
        %vm809 = vcmp.lt.f32.partialorder %v808, 0.0004427343
        %v810 = vsel %vm809, %v807, %v804
        %v811 = vadd.f32 %v650, 1.0
        %v812 = vlog2.pop %v811
        %v813 = vmul.f32 %v812, 0.6931472
        %v814 = vmul.f32 -0.5, %v650
        %v815 = vadd.f32 %v814, 1.0
        %v816 = vmul.f32 %v815, %v650
        %v817 = vand.u32 2147483647, %v650
        %vm818 = vcmp.lt.f32.partialorder %v817, 0.0004427343
        %v819 = vsel %vm818, %v816, %v813
        %v820 = vadd.f32 %v652, 1.0
        %v821 = vlog2.pop %v820
        %v822 = vmul.f32 %v821, 0.6931472
        %v823 = vmul.f32 -0.5, %v652
        %v824 = vadd.f32 %v823, 1.0
        %v825 = vmul.f32 %v824, %v652
        %v826 = vand.u32 2147483647, %v652
        %vm827 = vcmp.lt.f32.partialorder %v826, 0.0004427343
        %v828 = vsel %vm827, %v825, %v822
        %v829 = vadd.f32 %v654, 1.0
        %v830 = vlog2.pop %v829
        %v831 = vmul.f32 %v830, 0.6931472
        %v832 = vmul.f32 -0.5, %v654
        %v833 = vadd.f32 %v832, 1.0
        %v834 = vmul.f32 %v833, %v654
        %v835 = vand.u32 2147483647, %v654
        %vm836 = vcmp.lt.f32.partialorder %v835, 0.0004427343
        %v837 = vsel %vm836, %v834, %v831
        %v838 = vadd.f32 %v656, 1.0
        %v839 = vlog2.pop %v838
        %v840 = vmul.f32 %v839, 0.6931472
        %v841 = vmul.f32 -0.5, %v656
        %v842 = vadd.f32 %v841, 1.0
        %v843 = vmul.f32 %v842, %v656
        %v844 = vand.u32 2147483647, %v656
        %vm845 = vcmp.lt.f32.partialorder %v844, 0.0004427343
        %v846 = vsel %vm845, %v843, %v840
        %v847 = vadd.f32 %v658, 1.0
        %v848 = vlog2.pop %v847
        %v849 = vmul.f32 %v848, 0.6931472
        %v850 = vmul.f32 -0.5, %v658
        %v851 = vadd.f32 %v850, 1.0
        %v852 = vmul.f32 %v851, %v658
        %v853 = vand.u32 2147483647, %v658
        %vm854 = vcmp.lt.f32.partialorder %v853, 0.0004427343
        %v855 = vsel %vm854, %v852, %v849
        %v856 = vadd.f32 %v660, 1.0
        %v857 = vlog2.pop %v856
        %v858 = vmul.f32 %v857, 0.6931472
        %v859 = vmul.f32 -0.5, %v660
        %v860 = vadd.f32 %v859, 1.0
        %v861 = vmul.f32 %v860, %v660
        %v862 = vand.u32 2147483647, %v660
        %vm863 = vcmp.lt.f32.partialorder %v862, 0.0004427343
        %v864 = vsel %vm863, %v861, %v858
        %v865 = vadd.f32 %v662, 1.0
        %v866 = vlog2.pop %v865
        %v867 = vmul.f32 %v866, 0.6931472
        %v868 = vmul.f32 -0.5, %v662
        %v869 = vadd.f32 %v868, 1.0
        %v870 = vmul.f32 %v869, %v662
        %v871 = vand.u32 2147483647, %v662
        %vm872 = vcmp.lt.f32.partialorder %v871, 0.0004427343
        %v873 = vsel %vm872, %v870, %v867
        %v874 = vadd.f32 %v664, 1.0
        %v875 = vlog2.pop %v874
        %v876 = vmul.f32 %v875, 0.6931472
        %v877 = vmul.f32 -0.5, %v664
        %v878 = vadd.f32 %v877, 1.0
        %v879 = vmul.f32 %v878, %v664
        %v880 = vand.u32 2147483647, %v664
        %vm881 = vcmp.lt.f32.partialorder %v880, 0.0004427343
        %v882 = vsel %vm881, %v879, %v876
        %v883 = vadd.f32 %v666, 1.0
        %v884 = vlog2.pop %v883
        %v885 = vmul.f32 %v884, 0.6931472
        %v886 = vmul.f32 -0.5, %v666
        %v887 = vadd.f32 %v886, 1.0
        %v888 = vmul.f32 %v887, %v666
        %v889 = vand.u32 2147483647, %v666
        %vm890 = vcmp.lt.f32.partialorder %v889, 0.0004427343
        %v891 = vsel %vm890, %v888, %v885
        %v892 = vadd.f32 %v668, 1.0
        %v893 = vlog2.pop %v892
        %v894 = vmul.f32 %v893, 0.6931472
        %v895 = vmul.f32 -0.5, %v668
        %v896 = vadd.f32 %v895, 1.0
        %v897 = vmul.f32 %v896, %v668
        %v898 = vand.u32 2147483647, %v668
        %vm899 = vcmp.lt.f32.partialorder %v898, 0.0004427343
        %v900 = vsel %vm899, %v897, %v894
        %v901 = vadd.f32 %v670, 1.0
        %v902 = vlog2.pop %v901
        %v903 = vmul.f32 %v902, 0.6931472
        %v904 = vmul.f32 -0.5, %v670
        %v905 = vadd.f32 %v904, 1.0
        %v906 = vmul.f32 %v905, %v670
        %v907 = vand.u32 2147483647, %v670
        %vm908 = vcmp.lt.f32.partialorder %v907, 0.0004427343
        %v909 = vsel %vm908, %v906, %v903
        %v910 = vadd.f32 %v672, 1.0
        %v911 = vlog2.pop %v910
        %v912 = vmul.f32 %v911, 0.6931472
        %v913 = vmul.f32 -0.5, %v672
        %v914 = vadd.f32 %v913, 1.0
        %v915 = vmul.f32 %v914, %v672
        %v916 = vand.u32 2147483647, %v672
        %vm917 = vcmp.lt.f32.partialorder %v916, 0.0004427343
        %v918 = vsel %vm917, %v915, %v912
        %v919 = vadd.f32 %v674, 1.0
        %v920 = vlog2.pop %v919
        %v921 = vmul.f32 %v920, 0.6931472
        %v922 = vmul.f32 -0.5, %v674
        %v923 = vadd.f32 %v922, 1.0
        %v924 = vmul.f32 %v923, %v674
        %v925 = vand.u32 2147483647, %v674
        %vm926 = vcmp.lt.f32.partialorder %v925, 0.0004427343
        %v927 = vsel %vm926, %v924, %v921
        %v928 = vadd.f32 %v676, 1.0
        %v929 = vlog2.pop %v928
        %v930 = vmul.f32 %v929, 0.6931472
        %v931 = vmul.f32 -0.5, %v676
        %v932 = vadd.f32 %v931, 1.0
        %v933 = vmul.f32 %v932, %v676
        %v934 = vand.u32 2147483647, %v676
        %vm935 = vcmp.lt.f32.partialorder %v934, 0.0004427343
        %v936 = vsel %vm935, %v933, %v930
        %v937 = vadd.f32 %v678, 1.0
        %v938 = vlog2.pop %v937
        %v939 = vmul.f32 %v938, 0.6931472
        %v940 = vmul.f32 -0.5, %v678
        %v941 = vadd.f32 %v940, 1.0
        %v942 = vmul.f32 %v941, %v678
        %v943 = vand.u32 2147483647, %v678
        %vm944 = vcmp.lt.f32.partialorder %v943, 0.0004427343
        %v945 = vsel %vm944, %v942, %v939
        %v946 = vadd.f32 %v680, 1.0
        %v947 = vlog2.pop %v946
        %v948 = vmul.f32 %v947, 0.6931472
        %v949 = vmul.f32 -0.5, %v680
        %v950 = vadd.f32 %v949, 1.0
        %v951 = vmul.f32 %v950, %v680
        %v952 = vand.u32 2147483647, %v680
        %vm953 = vcmp.lt.f32.partialorder %v952, 0.0004427343
        %v954 = vsel %vm953, %v951, %v948
        %v955 = vadd.f32 %v682, 1.0
        %v956 = vlog2.pop %v955
        %v957 = vmul.f32 %v956, 0.6931472
        %v958 = vmul.f32 -0.5, %v682
        %v959 = vadd.f32 %v958, 1.0
        %v960 = vmul.f32 %v959, %v682
        %v961 = vand.u32 2147483647, %v682
        %vm962 = vcmp.lt.f32.partialorder %v961, 0.0004427343
        %v963 = vsel %vm962, %v960, %v957
        %v964 = vadd.f32 %v684, 1.0
        %v965 = vlog2.pop %v964
        %v966 = vmul.f32 %v965, 0.6931472
        %v967 = vmul.f32 -0.5, %v684
        %v968 = vadd.f32 %v967, 1.0
        %v969 = vmul.f32 %v968, %v684
        %v970 = vand.u32 2147483647, %v684
        %vm971 = vcmp.lt.f32.partialorder %v970, 0.0004427343
        %v972 = vsel %vm971, %v969, %v966
        %v973 = vsel %vm557, %v525, %v693
        %v974 = vsel %vm558, %v526, %v702
        %v975 = vsel %vm559, %v527, %v711
        %v976 = vsel %vm560, %v528, %v720
        %v977 = vsel %vm561, %v529, %v729
        %v978 = vsel %vm562, %v530, %v738
        %v979 = vsel %vm563, %v531, %v747
        %v980 = vsel %vm564, %v532, %v756
        %v981 = vsel %vm565, %v533, %v765
        %v982 = vsel %vm566, %v534, %v774
        %v983 = vsel %vm567, %v535, %v783
        %v984 = vsel %vm568, %v536, %v792
        %v985 = vsel %vm569, %v537, %v801
        %v986 = vsel %vm570, %v538, %v810
        %v987 = vsel %vm571, %v539, %v819
        %v988 = vsel %vm572, %v540, %v828
        %v989 = vsel %vm573, %v541, %v837
        %v990 = vsel %vm574, %v542, %v846
        %v991 = vsel %vm575, %v543, %v855
        %v992 = vsel %vm576, %v544, %v864
        %v993 = vsel %vm577, %v545, %v873
        %v994 = vsel %vm578, %v546, %v882
        %v995 = vsel %vm579, %v547, %v891
        %v996 = vsel %vm580, %v548, %v900
        %v997 = vsel %vm581, %v549, %v909
        %v998 = vsel %vm582, %v550, %v918
        %v999 = vsel %vm583, %v551, %v927
        %v1000 = vsel %vm584, %v552, %v936
        %v1001 = vsel %vm585, %v553, %v945
        %v1002 = vsel %vm586, %v554, %v954
        %v1003 = vsel %vm587, %v555, %v963
        %v1004 = vsel %vm588, %v556, %v972
        %v1005 = vld [vmem:[%s417] sm:$0xff]
        %v1006 = vld [vmem:[%s417 + $0x8] sm:$0xff]
        %v1007 = vld [vmem:[%s417 + $0x10] sm:$0xff]
        %v1008 = vld [vmem:[%s417 + $0x18] sm:$0xff]
        %v1009 = vld [vmem:[%s417 + $0x20] sm:$0xff]
        %v1010 = vld [vmem:[%s417 + $0x28] sm:$0xff]
        %v1011 = vld [vmem:[%s417 + $0x30] sm:$0xff]
        %v1012 = vld [vmem:[%s417 + $0x38] sm:$0xff]
        %v1013 = vld [vmem:[%s417 + $0x40] sm:$0xff]
        %v1014 = vld [vmem:[%s417 + $0x48] sm:$0xff]
        %v1015 = vld [vmem:[%s417 + $0x50] sm:$0xff]
        %v1016 = vld [vmem:[%s417 + $0x58] sm:$0xff]
        %v1017 = vld [vmem:[%s417 + $0x60] sm:$0xff]
        %v1018 = vld [vmem:[%s417 + $0x68] sm:$0xff]
        %v1019 = vld [vmem:[%s417 + $0x70] sm:$0xff]
        %v1020 = vld [vmem:[%s417 + $0x78] sm:$0xff]
        %v1021 = vld [vmem:[%s417 + $0x80] sm:$0xff]
        %v1022 = vld [vmem:[%s417 + $0x88] sm:$0xff]
        %v1023 = vld [vmem:[%s417 + $0x90] sm:$0xff]
        %v1024 = vld [vmem:[%s417 + $0x98] sm:$0xff]
        %v1025 = vld [vmem:[%s417 + $0xa0] sm:$0xff]
        %v1026 = vld [vmem:[%s417 + $0xa8] sm:$0xff]
        %v1027 = vld [vmem:[%s417 + $0xb0] sm:$0xff]
        %v1028 = vld [vmem:[%s417 + $0xb8] sm:$0xff]
        %v1029 = vld [vmem:[%s417 + $0xc0] sm:$0xff]
        %v1030 = vld [vmem:[%s417 + $0xc8] sm:$0xff]
        %v1031 = vld [vmem:[%s417 + $0xd0] sm:$0xff]
        %v1032 = vld [vmem:[%s417 + $0xd8] sm:$0xff]
        %v1033 = vld [vmem:[%s417 + $0xe0] sm:$0xff]
        %v1034 = vld [vmem:[%s417 + $0xe8] sm:$0xff]
        %v1035 = vld [vmem:[%s417 + $0xf0] sm:$0xff]
        %v1036 = vld [vmem:[%s417 + $0xf8] sm:$0xff]
        %v1037 = vmul.f32 %v973, %v1005
        %v1038 = vmul.f32 %v974, %v1006
        %v1039 = vmul.f32 %v975, %v1007
        %v1040 = vmul.f32 %v976, %v1008
        %v1041 = vmul.f32 %v977, %v1009
        %v1042 = vmul.f32 %v978, %v1010
        %v1043 = vmul.f32 %v979, %v1011
        %v1044 = vmul.f32 %v980, %v1012
        %v1045 = vmul.f32 %v981, %v1013
        %v1046 = vmul.f32 %v982, %v1014
        %v1047 = vmul.f32 %v983, %v1015
        %v1048 = vmul.f32 %v984, %v1016
        %v1049 = vmul.f32 %v985, %v1017
        %v1050 = vmul.f32 %v986, %v1018
        %v1051 = vmul.f32 %v987, %v1019
        %v1052 = vmul.f32 %v988, %v1020
        %v1053 = vmul.f32 %v989, %v1021
        %v1054 = vmul.f32 %v990, %v1022
        %v1055 = vmul.f32 %v991, %v1023
        %v1056 = vmul.f32 %v992, %v1024
        %v1057 = vmul.f32 %v993, %v1025
        %v1058 = vmul.f32 %v994, %v1026
        %v1059 = vmul.f32 %v995, %v1027
        %v1060 = vmul.f32 %v996, %v1028
        %v1061 = vmul.f32 %v997, %v1029
        %v1062 = vmul.f32 %v998, %v1030
        %v1063 = vmul.f32 %v999, %v1031
        %v1064 = vmul.f32 %v1000, %v1032
        %v1065 = vmul.f32 %v1001, %v1033
        %v1066 = vmul.f32 %v1002, %v1034
        %v1067 = vmul.f32 %v1003, %v1035
        %v1068 = vmul.f32 %v1004, %v1036
        %v1069 = vadd.f32 %v493, %v1037
        %v1070 = vadd.f32 %v494, %v1038
        %v1071 = vadd.f32 %v495, %v1039
        %v1072 = vadd.f32 %v496, %v1040
        %v1073 = vadd.f32 %v497, %v1041
        %v1074 = vadd.f32 %v498, %v1042
        %v1075 = vadd.f32 %v499, %v1043
        %v1076 = vadd.f32 %v500, %v1044
        %v1077 = vadd.f32 %v501, %v1045
        %v1078 = vadd.f32 %v502, %v1046
        %v1079 = vadd.f32 %v503, %v1047
        %v1080 = vadd.f32 %v504, %v1048
        %v1081 = vadd.f32 %v505, %v1049
        %v1082 = vadd.f32 %v506, %v1050
        %v1083 = vadd.f32 %v507, %v1051
        %v1084 = vadd.f32 %v508, %v1052
        %v1085 = vadd.f32 %v509, %v1053
        %v1086 = vadd.f32 %v510, %v1054
        %v1087 = vadd.f32 %v511, %v1055
        %v1088 = vadd.f32 %v512, %v1056
        %v1089 = vadd.f32 %v513, %v1057
        %v1090 = vadd.f32 %v514, %v1058
        %v1091 = vadd.f32 %v515, %v1059
        %v1092 = vadd.f32 %v516, %v1060
        %v1093 = vadd.f32 %v517, %v1061
        %v1094 = vadd.f32 %v518, %v1062
        %v1095 = vadd.f32 %v519, %v1063
        %v1096 = vadd.f32 %v520, %v1064
        %v1097 = vadd.f32 %v521, %v1065
        %v1098 = vadd.f32 %v522, %v1066
        %v1099 = vadd.f32 %v523, %v1067
        %v1100 = vadd.f32 %v524, %v1068
        %v1101 = vld [vmem:[#allocation2] sm:$0xff]
        %v1102 = vld [vmem:[%s390] sm:$0xff]
        %v1103 = vld [vmem:[%s390 + $0x8] sm:$0xff]
        %1104 = vmatprep.subr.mxu0 %v1070
        %1105 = vmatpush1.xpose.msra.mxu0 %v1069
        %1106 = vmatprep.subr.mxu0 %v1072
        %1107 = vmatpush1.xpose.msra.mxu0 %v1071
        %1108 = vmatprep.subr.mxu0 %v1074
        %1109 = vmatpush1.xpose.msra.mxu0 %v1073
        %1110 = vmatprep.subr.mxu0 %v1076
        %1111 = vmatpush1.xpose.msra.mxu0 %v1075
        %1112 = vmatprep.subr.mxu0 %v1078
        %1113 = vmatpush1.xpose.msra.mxu0 %v1077
        %1114 = vmatprep.subr.mxu0 %v1080
        %1115 = vmatpush1.xpose.msra.mxu0 %v1079
        %1116 = vmatprep.subr.mxu0 %v1082
        %1117 = vmatpush1.xpose.msra.mxu0 %v1081
        %1118 = vmatprep.subr.mxu0 %v1084
        %1119 = vmatpush1.xpose.msra.mxu0 %v1083
        %1120 = vmatprep.subr.mxu0 %v1086
        %1121 = vmatpush1.xpose.msra.mxu0 %v1085
        %1122 = vmatprep.subr.mxu0 %v1088
        %1123 = vmatpush1.xpose.msra.mxu0 %v1087
        %1124 = vmatprep.subr.mxu0 %v1090
        %1125 = vmatpush1.xpose.msra.mxu0 %v1089
        %1126 = vmatprep.subr.mxu0 %v1092
        %1127 = vmatpush1.xpose.msra.mxu0 %v1091
        %1128 = vmatprep.subr.mxu0 %v1094
        %1129 = vmatpush1.xpose.msra.mxu0 %v1093
        %1130 = vmatprep.subr.mxu0 %v1096
        %1131 = vmatpush1.xpose.msra.mxu0 %v1095
        %1132 = vmatprep.subr.mxu0 %v1098
        %1133 = vmatpush1.xpose.msra.mxu0 %v1097
        %1134 = vmatprep.subr.mxu0 %v1100
        %1135 = vmatpush1.xpose.msra.mxu0 %v1099
        %1136 = vmatprep.subr.mxu0 0.0
        %1137 = vmatpush1.xpose.msra.mxu0 0.0
        %1138 = vmatprep.subr.mxu0 0.0
        %1139 = vmatpush1.xpose.msra.mxu0 0.0
        %1140 = vmatprep.subr.mxu0 0.0
        %1141 = vmatpush1.xpose.msra.mxu0 0.0
        %1142 = vmatprep.subr.mxu0 0.0
        %1143 = vmatpush1.xpose.msra.mxu0 0.0
        %1144 = vmatprep.subr.mxu0 0.0
        %1145 = vmatpush1.xpose.msra.mxu0 0.0
        %1146 = vmatprep.subr.mxu0 0.0
        %1147 = vmatpush1.xpose.msra.mxu0 0.0
        %1148 = vmatprep.subr.mxu0 0.0
        %1149 = vmatpush1.xpose.msra.mxu0 0.0
        %1150 = vmatprep.subr.mxu0 0.0
        %1151 = vmatpush1.xpose.msra.mxu0 0.0
        %1152 = vmatprep.subr.mxu0 0.0
        %1153 = vmatpush1.xpose.msra.mxu0 0.0
        %1154 = vmatprep.subr.mxu0 0.0
        %1155 = vmatpush1.xpose.msra.mxu0 0.0
        %1156 = vmatprep.subr.mxu0 0.0
        %1157 = vmatpush1.xpose.msra.mxu0 0.0
        %1158 = vmatprep.subr.mxu0 0.0
        %1159 = vmatpush1.xpose.msra.mxu0 0.0
        %1160 = vmatprep.subr.mxu0 0.0
        %1161 = vmatpush1.xpose.msra.mxu0 0.0
        %1162 = vmatprep.subr.mxu0 0.0
        %1163 = vmatpush1.xpose.msra.mxu0 0.0
        %1164 = vmatprep.subr.mxu0 0.0
        %1165 = vmatpush1.xpose.msra.mxu0 0.0
        %1166 = vmatprep.subr.mxu0 0.0
        %1167 = vmatpush1.xpose.msra.mxu0 0.0
        %1168 = vmatprep.mubr.f32.mxu0 %v1103
        %1169 = vmatmul.mubr.f32.gmra.mrb[0].mxu0 %v1102
        %v1170 = vpop.f32.mrb[0].mxu0
        %v1171 = vadd.f32 0.0, %v1170
        %v1172 = vpop.f32.mrb[0].mxu0
        %1173 = vdwg.mxu0
        %v1174 = vadd.f32 %v1101, %v1171
        %1175 = vst [vmem:[#allocation2] sm:$0xff] %v1174
        %p1176 = scmp.eq.s32.totalorder %s35, 1
        // Predicated region
        $region69: #{tpu_custom_call.1} parent=47 // pred_check
          %p1177 = pneg %p1176
        $region70: #{tpu_custom_call.1} parent=47 // pred_check_branch
          %1179 = sbr.rel (%p1177) target = $region72
        $region71: #{tpu_custom_call.1} parent=47 // pred_region
          %v1180 = vld [vmem:[%s481] sm:$0x1]
          %v1181 = vld [vmem:[%s484] sm:$0x1]
          %vm1182 = vcmp.gt.f32.partialorder %v1181, 20.0
          %v1183 = vmin.f32 %v1181, 20.0
          %v1184 = vmul.f32 %v1183, 1.442695
          %v1185 = vpow.pop %v1184
          %v1186 = vadd.f32 %v1185, 1.0
          %v1187 = vlog2.pop %v1186
          %v1188 = vmul.f32 %v1187, 0.6931472
          %v1189 = vmul.f32 -0.5, %v1185
          %v1190 = vadd.f32 %v1189, 1.0
          %v1191 = vmul.f32 %v1190, %v1185
          %v1192 = vand.u32 2147483647, %v1185
          %vm1193 = vcmp.lt.f32.partialorder %v1192, 0.0004427343
          %v1194 = vsel %vm1193, %v1191, %v1188
          %v1195 = vsel %vm1182, %v1181, %v1194
          %v1196 = vld [vmem:[%s487] sm:$0x1]
          %v1197 = vmul.f32 %v1195, %v1196
          %v1198 = vadd.f32 %v1180, %v1197
          %v1199 = vld [vmem:[#allocation2] sm:$0xff]
          %v1201 = vlaneseq
          %v1202 = vshrl.u32 %v1201, 7
          %v1203 = vsub.s32 0, %v1202
          %v1204 = vrot.slane %v1198, %v1203
          %v1206 = vadd.f32 %v1199, %v1204
          %1207 = vst [vmem:[%s471] sm:$0xff] %v1206
        $region72: #{tpu_custom_call.1} parent=47 // pred_fallthru
          _
        %s1208 = sand.u32 %s238, 1
        %s1209 = scalar_lea.sflag [#allocation5], %s1208
        %s1210 = sand.u32 %s238, 1
        %s1211 = smul.addr %s1210, 8
        %s1212 = scalar_lea.vmem [#allocation11], %s1211
        // Predicated region
        $region73: #{tpu_custom_call.1} parent=47 // pred_check
          %p1213 = pneg %p248
        $region74: #{tpu_custom_call.1} parent=47 // pred_check_branch
          %1215 = sbr.rel (%p1213) target = $region76
        $region75: #{tpu_custom_call.1} parent=47 // pred_region
          %s1217 = ssub.s32 128, 128
          %1218 = vsyncadd %s1209, %s1217
          %s1219 = smul.addr %s34, 128
          %s1220 = scalar_lea.hbm %s7, %s1219
          %s1222 = sshll.u32 %s1212, 4
          %s1223 = int_to_ptr.vmem [resolvable:$true] %s1222
          %1225 = dma.vmem_to_hbm [thread:$0]  %s1223, 128, %s1220, %s1209
        $region76: #{tpu_custom_call.1} parent=47 // pred_fallthru
          _
      $region48: #{tpu_custom_call.1} parent=5 // pred_fallthru
        _
      %p1226 = scmp.le.s32.totalorder 2, %s25
      // Predicated region
      $region77: #{tpu_custom_call.1} parent=5 // pred_check
        %p1227 = pneg %p1226
      $region78: #{tpu_custom_call.1} parent=5 // pred_check_branch
        %1229 = sbr.rel (%p1227) target = $region80
      $region79: #{tpu_custom_call.1} parent=5 // pred_region
        %s1230 = ssub.s32 %s25, 2
        // Predicated region
        $region81: #{tpu_custom_call.1} parent=79 // pred_check
          %p1231 = pneg %p254
        $region82: #{tpu_custom_call.1} parent=79 // pred_check_branch
          %1233 = sbr.rel (%p1231) target = $region84
        $region83: #{tpu_custom_call.1} parent=79 // pred_region
          %s1234 = sand.u32 %s239, 1
          %s1235 = scalar_lea.sflag [#allocation5], %s1234
          %s1236 = sand.u32 %s239, 1
          %s1237 = smul.addr %s1236, 8
          %s1238 = scalar_lea.vmem [#allocation11], %s1237
          %1239 = dma.done %s1235, 128
        $region84: #{tpu_custom_call.1} parent=79 // pred_fallthru
          _
      $region80: #{tpu_custom_call.1} parent=5 // pred_fallthru
        _
    $region6: #{tpu_custom_call.1} parent=1 // loop_footer
      %s29 = sadd.s32 1, %s25
    $region7: #{tpu_custom_call.1} parent=1 // loop_footer_branch
      %24 = sbr.rel target = $region3
    $region8: #{tpu_custom_call.1} parent=1 // loop_exit
      _
    %1240 = vsyncpa [#allocation4], 1
    %s1241 = scalar_lea.sflag [#allocation4], 1
    %1242 = vsyncpa %s1241, 1
    %1243 = vsyncpa [#allocation7], 1
    %s1244 = scalar_lea.sflag [#allocation7], 1
    %1245 = vsyncpa %s1244, 1
    %1246 = vsyncpa [#allocation10], 1
    %s1247 = scalar_lea.sflag [#allocation10], 1
    %1248 = vsyncpa %s1247, 1
    %1249 = vsyncpa [#allocation5], 1
    %s1250 = scalar_lea.sflag [#allocation5], 1
    %1251 = vsyncpa %s1250, 1

</llo_original>
